<compile_context>
chip_gen: v7x
topology: tpu7x:2x2x1
jax: 0.10.0
libtpu: 0.0.40
codegen_flags: <defaults>
</compile_context>

<pallas_src>
import functools

import jax
import jax.numpy as jnp
from jax.experimental import pallas as pl
from jax.experimental.pallas import tpu as pltpu

_UNARY_FNS = {
    "sin": jnp.sin,
    "cos": jnp.cos,
    "square": lambda v: v * v,
}
_BINARY_FNS = {
    "+": lambda a, b: a + b,
    "*": lambda a, b: a * b,
}
OPERATIONS = {
    "unary": ["sin", "cos", "square"],
    "binary": ["+", "*"],
}

LANES = 128  # width of in-kernel (VMEM/vreg-only) intermediates


def _round_up(x, m):
    return ((x + m - 1) // m) * m


def _src_lane(j, n_unary):
    """Lane inside a layer's z tile that holds compact output column j."""
    return j if j < n_unary else n_unary + 2 * (j - n_unary)


# ---------------------------------------------------------------------------
# In-kernel helpers
# ---------------------------------------------------------------------------
def _apply_ops(z, unary_names, binary_names):
    """Full-vreg unary/binary application on z (tile_b, 128) f32.

    Result ("source lane") layout:
      lane i   (i < U)   = unary_i(z[:, i])
      lane U + 2n        = binary_n(z[:, U+2n], z[:, U+2n+1])
      every other lane   = exactly 0   (required: results are merged into the
                                        packed history tile with a plain add)
    sin/cos share ONE EUP pass: sin(z + phase), phase = pi/2 on cos lanes.
    """
    n_unary = len(unary_names)
    lane = jax.lax.broadcasted_iota(jnp.int32, z.shape, dimension=z.ndim - 1)
    sel = jnp.zeros_like(z)

    # --- fused sin/cos (single transcendental pass on the EUP) -------------
    trig_lanes = [i for i, nm in enumerate(unary_names) if nm in ("sin", "cos")]
    if trig_lanes:
        phase = jnp.zeros_like(z)
        for i, nm in enumerate(unary_names):
            if nm == "cos":
                phase = jnp.where(lane == i, jnp.float32(jnp.pi / 2), phase)
        trig = jnp.sin(z + phase)
        for i in trig_lanes:
            sel = jnp.where(lane == i, trig, sel)

    # --- remaining unary ops (VALU) ----------------------------------------
    for i, nm in enumerate(unary_names):
        if nm in ("sin", "cos"):
            continue
        sel = jnp.where(lane == i, _UNARY_FNS[nm](z), sel)

    # --- binary ops: partner[:, i] == z[:, i+1] via one XLU lane rotation ---
    if binary_names:
        partner = pltpu.roll(z, z.shape[-1] - 1, z.ndim - 1)
        for n, nm in enumerate(binary_names):
            sel = jnp.where(lane == (n_unary + 2 * n),
                            _BINARY_FNS[nm](z, partner), sel)
    return sel


def _nn_kernel(*refs, n_layers, unary_names, binary_names, out_size):
    """refs layout:
         refs[0]                      : x tile (tile_b, in_features) f32
         hidden layer 0               : Wx0_0 (in_f,128), bias_0 (1,128)
         hidden layer l >= 1          : Whist_l (128,128), Wx0_l (in_f,128), bias_l (1,128)
         output layer                 : Whist_out (128,128), Wx0_out (in_f,128), bias_out (1,128)
         refs[-1]                     : output tile (tile_b, out_size) f32
       Weight rows for layer k's compact output column j are scattered (in the
       wrapper) to packed-history lane k*H + src(j), so no concatenation or
       compaction is ever needed in the kernel.
    """
    n_unary, n_binary = len(unary_names), len(binary_names)
    H = n_unary + 2 * n_binary            # per-layer lane-group width

    x_ref, out_ref = refs[0], refs[-1]
    x = x_ref[...]                        # (tile_b, in_features) f32

    def mm(act, w_ref):
        # bf16 (or f32) MXU matmul, f32 accumulation
        return jnp.dot(act.astype(w_ref.dtype), w_ref[...],
                       preferred_element_type=jnp.float32)

    history = None                        # packed activations, f32 (tile_b, 128)
    idx = 1
    for l in range(n_layers + 1):         # hidden layers then the output layer
        if l == 0:
            wx_ref, b_ref = refs[idx], refs[idx + 1]
            idx += 2
            z = mm(x, wx_ref) + b_ref[...]
        else:
            wh_ref, wx_ref, b_ref = refs[idx], refs[idx + 1], refs[idx + 2]
            idx += 3
            z = mm(history, wh_ref) + mm(x, wx_ref) + b_ref[...]

        if l == n_layers:
            # lane-narrow store: output array is (b_pad, out_size), no padding
            out_ref[...] = z[:, :out_size]
        else:
            sel = _apply_ops(z, unary_names, binary_names)
            if l == 0:
                history = sel
            else:
                # shift this layer's results into lane group [l*H, l*H+H) and
                # accumulate; all other lanes of the rolled tile are zero.
                history = history + pltpu.roll(sel, l * H, sel.ndim - 1)


# ---------------------------------------------------------------------------
# Wrapper-side weight preparation (plain JAX, runs once)
# ---------------------------------------------------------------------------
def _hist_block(wt_prev, l, m, n_unary, H, dtype):
    """wt_prev: (l*m, n_out) transposed-weight rows multiplying
    [y_{l-1}, ..., y_0] (PyTorch cat order).  Row for y_k column j is placed
    at packed-history lane k*H + src(j); output columns padded to 128."""
    n_out = wt_prev.shape[1]
    blk = jnp.zeros((LANES, LANES), jnp.float32)
    for p in range(l):
        k = l - 1 - p                         # history group of y_{l-1-p}
        for j in range(m):
            blk = blk.at[k * H + _src_lane(j, n_unary), :n_out].set(
                wt_prev[p * m + j])
    return blk.astype(dtype)


def _x0_block(wt_x0, dtype):
    """wt_x0: (in_features, n_out) rows multiplying the raw input x0."""
    in_f, n_out = wt_x0.shape
    blk = jnp.zeros((in_f, LANES), jnp.float32).at[:, :n_out].set(wt_x0)
    return blk.astype(dtype)


def _bias_row(b):
    return jnp.zeros((1, LANES), jnp.float32).at[0, :b.shape[0]].set(
        b.astype(jnp.float32))


# ---------------------------------------------------------------------------
# Parameter construction (deterministic, mirroring nn.Linear shapes)
# ---------------------------------------------------------------------------
def init_nn_params(key, operations, input_features, output_size, n_layers):
    n_unary = len(operations["unary"])
    n_binary = len(operations["binary"])
    n_hidden_units = n_unary + 2 * n_binary
    layer_out = n_unary + n_binary

    params = []
    in_features = input_features
    for _ in range(n_layers):
        key, kw, kb = jax.random.split(key, 3)
        bound = 1.0 / (in_features ** 0.5)
        w = jax.random.uniform(kw, (n_hidden_units, in_features),
                               minval=-bound, maxval=bound, dtype=jnp.float32)
        b = jax.random.uniform(kb, (n_hidden_units,),
                               minval=-bound, maxval=bound, dtype=jnp.float32)
        params.append((w, b))
        in_features += layer_out

    key, kw, kb = jax.random.split(key, 3)
    bound = 1.0 / (in_features ** 0.5)
    w_out = jax.random.uniform(kw, (output_size, in_features),
                               minval=-bound, maxval=bound, dtype=jnp.float32)
    b_out = jax.random.uniform(kb, (output_size,),
                               minval=-bound, maxval=bound, dtype=jnp.float32)
    return params, (w_out, b_out)


# ---------------------------------------------------------------------------
# Forward wrapper
# ---------------------------------------------------------------------------
def nn_forward(x, layer_params, out_params, operations, *,
               tile_b=2048, weight_dtype=jnp.bfloat16):
    unary = tuple(operations["unary"])
    binary = tuple(operations["binary"])
    n_unary, n_binary = len(unary), len(binary)
    H = n_unary + 2 * n_binary            # hidden units / lane-group width
    m = n_unary + n_binary                # compact per-layer output width
    n_layers = len(layer_params)

    batch, in_features = x.shape
    w_out, b_out = out_params
    out_size = w_out.shape[0]

    assert n_layers >= 1
    # Packed-history invariant: every result lane (and its roll-by-1 binary
    # partner) must live strictly inside the 128-lane tile, no wrap-around.
    assert n_layers * H <= LANES, "history lane groups exceed 128 lanes"
    assert out_size <= LANES

    # --- batch tiling: large tiles, but keep >=2 grid steps when there is
    #     enough work so both v7x TensorCores get a share of the batch axis.
    b8 = _round_up(batch, 8)
    tile = min(tile_b, b8)
    half = _round_up((b8 + 1) // 2, 8)
    if half >= 256:
        tile = min(tile, half)
    tile = _round_up(tile, 8)
    b_pad = _round_up(batch, tile)

    x32 = x.astype(jnp.float32)
    if b_pad != batch:
        x32 = jnp.zeros((b_pad, in_features), jnp.float32).at[:batch].set(x32)

    args = [x32]
    in_specs = [pl.BlockSpec((tile, in_features), lambda i: (i, 0))]
    wh_spec = pl.BlockSpec((LANES, LANES), lambda i: (0, 0))     # resident weights
    wx_spec = pl.BlockSpec((in_features, LANES), lambda i: (0, 0))
    b_spec = pl.BlockSpec((1, LANES), lambda i: (0, 0))

    for l, (w, b) in enumerate(layer_params):
        wt = w.T.astype(jnp.float32)      # (in_features + l*m, H)
        if l > 0:
            args.append(_hist_block(wt[:l * m], l, m, n_unary, H, weight_dtype))
            in_specs.append(wh_spec)
        args.append(_x0_block(wt[l * m:], weight_dtype))
        in_specs.append(wx_spec)
        args.append(_bias_row(b))
        in_specs.append(b_spec)

    wot = w_out.T.astype(jnp.float32)     # (in_features + L*m, out_size)
    args.append(_hist_block(wot[:n_layers * m], n_layers, m, n_unary, H,
                            weight_dtype))
    in_specs.append(wh_spec)
    args.append(_x0_block(wot[n_layers * m:], weight_dtype))
    in_specs.append(wx_spec)
    args.append(_bias_row(b_out))
    in_specs.append(b_spec)

    kernel = functools.partial(_nn_kernel, n_layers=n_layers,
                               unary_names=unary, binary_names=binary,
                               out_size=out_size)

    out = pl.pallas_call(
        kernel,
        out_shape=jax.ShapeDtypeStruct((b_pad, out_size), jnp.float32),
        grid=(b_pad // tile,),
        in_specs=in_specs,
        out_specs=pl.BlockSpec((tile, out_size), lambda i: (i, 0)),
        compiler_params=pltpu.CompilerParams(
            dimension_semantics=("parallel",),
            vmem_limit_bytes=48 * 1024 * 1024),
    )(*args)

    return out if b_pad == batch else out[:batch]


# ---------------------------------------------------------------------------
# Pure-JAX reference for verification
# ---------------------------------------------------------------------------
def nn_forward_ref(x, layer_params, out_params, operations):
    unary_fns = [_UNARY_FNS[n] for n in operations["unary"]]
    binary_fns = [_BINARY_FNS[n] for n in operations["binary"]]
    n_unary = len(unary_fns)
    n_hidden = n_unary + 2 * len(binary_fns)
    hp = jax.lax.Precision.HIGHEST
    x = x.astype(jnp.float32)
    for w, b in layer_params:
        z = jnp.dot(x, w.T, precision=hp) + b
        cols = [f(z[:, i]) for i, f in enumerate(unary_fns)]
        n = 0
        for i in range(n_unary, n_hidden, 2):
            cols.append(binary_fns[n](z[:, i], z[:, i + 1]))
            n += 1
        y = jnp.stack(cols, axis=-1)
        x = jnp.concatenate([y, x], axis=-1)
    w_out, b_out = out_params
    return jnp.dot(x, w_out.T, precision=hp) + b_out


if __name__ == "__main__":
    input_features = 10
    output_size = 1
    n_layers = 2
    batch = 8

    key = jax.random.PRNGKey(0)
    key, kx = jax.random.split(key)
    x = jax.random.normal(kx, (batch, input_features), dtype=jnp.float32)

    layer_params, out_params = init_nn_params(
        key, OPERATIONS, input_features, output_size, n_layers)

    ref = nn_forward_ref(x, layer_params, out_params, OPERATIONS)

    # f32-weight path: tight check of the packed-history / lane-scatter structure.
    out_f32 = jax.block_until_ready(
        nn_forward(x, layer_params, out_params, OPERATIONS,
                   weight_dtype=jnp.float32))
    assert out_f32.shape == (batch, output_size)
    assert jnp.allclose(out_f32, ref, atol=2e-4, rtol=2e-4), (out_f32, ref)

    # Default bf16-weight fast path (native MXU dtype on v6e/v7x): loose check.
    out_bf16 = jax.block_until_ready(
        nn_forward(x, layer_params, out_params, OPERATIONS))
    assert out_bf16.shape == (batch, output_size)
    assert jnp.allclose(out_bf16, ref, atol=1e-1, rtol=1e-1), (out_bf16, ref)

    print("KERNEL_OK")
</pallas_src>

<mosaic_0001>
module attributes {stable_mosaic.version = 11 : i64} {
  func.func @_nn_kernel(%arg0: i32, %arg1: memref<8x10xf32, #tpu.memory_space<vmem>>, %arg2: memref<10x128xf32, #tpu.memory_space<vmem>>, %arg3: memref<1x128xf32, #tpu.memory_space<vmem>>, %arg4: memref<128x128xf32, #tpu.memory_space<vmem>>, %arg5: memref<10x128xf32, #tpu.memory_space<vmem>>, %arg6: memref<1x128xf32, #tpu.memory_space<vmem>>, %arg7: memref<128x128xf32, #tpu.memory_space<vmem>>, %arg8: memref<10x128xf32, #tpu.memory_space<vmem>>, %arg9: memref<1x128xf32, #tpu.memory_space<vmem>>, %arg10: memref<8x1xf32, #tpu.memory_space<vmem>>) attributes {dimension_semantics = [#tpu.dimension_semantics<parallel>], iteration_bounds = array<i64: 1>, scalar_prefetch = 0 : i64, scratch_operands = 0 : i64, tpu.core_type = #tpu.core_type<tc>, window_params = [{transform_indices = @transform_0, window_bounds = array<i64: 8, 10>}, {pipeline_mode = #tpu.pipeline_mode<synchronous>, transform_indices = @transform_1, window_bounds = array<i64: 10, 128>}, {pipeline_mode = #tpu.pipeline_mode<synchronous>, transform_indices = @transform_2, window_bounds = array<i64: 1, 128>}, {pipeline_mode = #tpu.pipeline_mode<synchronous>, transform_indices = @transform_3, window_bounds = array<i64: 128, 128>}, {pipeline_mode = #tpu.pipeline_mode<synchronous>, transform_indices = @transform_4, window_bounds = array<i64: 10, 128>}, {pipeline_mode = #tpu.pipeline_mode<synchronous>, transform_indices = @transform_5, window_bounds = array<i64: 1, 128>}, {pipeline_mode = #tpu.pipeline_mode<synchronous>, transform_indices = @transform_6, window_bounds = array<i64: 128, 128>}, {pipeline_mode = #tpu.pipeline_mode<synchronous>, transform_indices = @transform_7, window_bounds = array<i64: 10, 128>}, {pipeline_mode = #tpu.pipeline_mode<synchronous>, transform_indices = @transform_8, window_bounds = array<i64: 1, 128>}, {transform_indices = @transform_9, window_bounds = array<i64: 8, 1>}]} {
    %c0 = arith.constant 0 : index
    %c0_0 = arith.constant 0 : index
    %0 = vector.load %arg1[%c0, %c0_0] : memref<8x10xf32, #tpu.memory_space<vmem>>, vector<8x10xf32>
    %c0_1 = arith.constant 0 : index
    %c0_2 = arith.constant 0 : index
    %1 = vector.load %arg2[%c0_1, %c0_2] : memref<10x128xf32, #tpu.memory_space<vmem>>, vector<10x128xf32>
    %cst = arith.constant dense<0.000000e+00> : vector<8x128xf32>
    %2 = tpu.matmul %0, %1, %cst {dimension_numbers = #tpu.dot_dimension_numbers<[1], [0], [0], [1], [0, 0, 1, 1], [], []>} : vector<8x10xf32>, vector<10x128xf32>, vector<8x128xf32> -> vector<8x128xf32>
    %c0_3 = arith.constant 0 : index
    %c0_4 = arith.constant 0 : index
    %3 = vector.load %arg3[%c0_3, %c0_4] : memref<1x128xf32, #tpu.memory_space<vmem>>, vector<1x128xf32>
    %4 = vector.broadcast %3 : vector<1x128xf32> to vector<8x128xf32>
    %5 = arith.addf %2, %4 : vector<8x128xf32>
    %6 = tpu.iota {dimensions = array<i32: 1>} : vector<8x128xi32>
    %cst_5 = arith.constant 0.000000e+00 : f32
    %7 = vector.broadcast %cst_5 : f32 to vector<8x128xf32>
    %cst_6 = arith.constant 0.000000e+00 : f32
    %8 = vector.broadcast %cst_6 : f32 to vector<8x128xf32>
    %c1_i32 = arith.constant 1 : i32
    %9 = vector.broadcast %c1_i32 : i32 to vector<8x128xi32>
    %10 = arith.cmpi eq, %6, %9 : vector<8x128xi32>
    %cst_7 = arith.constant 1.57079637 : f32
    %11 = vector.broadcast %cst_7 : f32 to vector<8x128xf32>
    %12 = arith.select %10, %11, %8 : vector<8x128xi1>, vector<8x128xf32>
    %13 = arith.addf %5, %12 : vector<8x128xf32>
    %14 = math.sin %13 : vector<8x128xf32>
    %c0_i32 = arith.constant 0 : i32
    %15 = vector.broadcast %c0_i32 : i32 to vector<8x128xi32>
    %16 = arith.cmpi eq, %6, %15 : vector<8x128xi32>
    %17 = arith.select %16, %14, %7 : vector<8x128xi1>, vector<8x128xf32>
    %c1_i32_8 = arith.constant 1 : i32
    %18 = vector.broadcast %c1_i32_8 : i32 to vector<8x128xi32>
    %19 = arith.cmpi eq, %6, %18 : vector<8x128xi32>
    %20 = arith.select %19, %14, %17 : vector<8x128xi1>, vector<8x128xf32>
    %c2_i32 = arith.constant 2 : i32
    %21 = vector.broadcast %c2_i32 : i32 to vector<8x128xi32>
    %22 = arith.cmpi eq, %6, %21 : vector<8x128xi32>
    %23 = arith.mulf %5, %5 : vector<8x128xf32>
    %24 = arith.select %22, %23, %20 : vector<8x128xi1>, vector<8x128xf32>
    %c127_i32 = arith.constant 127 : i32
    %25 = tpu.dynamic_rotate %5 by %c127_i32 dim 1 : vector<8x128xf32>, i32 -> vector<8x128xf32>
    %c3_i32 = arith.constant 3 : i32
    %26 = vector.broadcast %c3_i32 : i32 to vector<8x128xi32>
    %27 = arith.cmpi eq, %6, %26 : vector<8x128xi32>
    %28 = arith.addf %5, %25 : vector<8x128xf32>
    %29 = arith.select %27, %28, %24 : vector<8x128xi1>, vector<8x128xf32>
    %c5_i32 = arith.constant 5 : i32
    %30 = vector.broadcast %c5_i32 : i32 to vector<8x128xi32>
    %31 = arith.cmpi eq, %6, %30 : vector<8x128xi32>
    %32 = arith.mulf %5, %25 : vector<8x128xf32>
    %33 = arith.select %31, %32, %29 : vector<8x128xi1>, vector<8x128xf32>
    %c0_9 = arith.constant 0 : index
    %c0_10 = arith.constant 0 : index
    %34 = vector.load %arg4[%c0_9, %c0_10] : memref<128x128xf32, #tpu.memory_space<vmem>>, vector<128x128xf32>
    %cst_11 = arith.constant dense<0.000000e+00> : vector<8x128xf32>
    %35 = tpu.matmul %33, %34, %cst_11 {dimension_numbers = #tpu.dot_dimension_numbers<[1], [0], [0], [1], [0, 0, 1, 1], [], []>} : vector<8x128xf32>, vector<128x128xf32>, vector<8x128xf32> -> vector<8x128xf32>
    %c0_12 = arith.constant 0 : index
    %c0_13 = arith.constant 0 : index
    %36 = vector.load %arg5[%c0_12, %c0_13] : memref<10x128xf32, #tpu.memory_space<vmem>>, vector<10x128xf32>
    %cst_14 = arith.constant dense<0.000000e+00> : vector<8x128xf32>
    %37 = tpu.matmul %0, %36, %cst_14 {dimension_numbers = #tpu.dot_dimension_numbers<[1], [0], [0], [1], [0, 0, 1, 1], [], []>} : vector<8x10xf32>, vector<10x128xf32>, vector<8x128xf32> -> vector<8x128xf32>
    %38 = arith.addf %35, %37 : vector<8x128xf32>
    %c0_15 = arith.constant 0 : index
    %c0_16 = arith.constant 0 : index
    %39 = vector.load %arg6[%c0_15, %c0_16] : memref<1x128xf32, #tpu.memory_space<vmem>>, vector<1x128xf32>
    %40 = vector.broadcast %39 : vector<1x128xf32> to vector<8x128xf32>
    %41 = arith.addf %38, %40 : vector<8x128xf32>
    %42 = tpu.iota {dimensions = array<i32: 1>} : vector<8x128xi32>
    %cst_17 = arith.constant 0.000000e+00 : f32
    %43 = vector.broadcast %cst_17 : f32 to vector<8x128xf32>
    %cst_18 = arith.constant 0.000000e+00 : f32
    %44 = vector.broadcast %cst_18 : f32 to vector<8x128xf32>
    %c1_i32_19 = arith.constant 1 : i32
    %45 = vector.broadcast %c1_i32_19 : i32 to vector<8x128xi32>
    %46 = arith.cmpi eq, %42, %45 : vector<8x128xi32>
    %cst_20 = arith.constant 1.57079637 : f32
    %47 = vector.broadcast %cst_20 : f32 to vector<8x128xf32>
    %48 = arith.select %46, %47, %44 : vector<8x128xi1>, vector<8x128xf32>
    %49 = arith.addf %41, %48 : vector<8x128xf32>
    %50 = math.sin %49 : vector<8x128xf32>
    %c0_i32_21 = arith.constant 0 : i32
    %51 = vector.broadcast %c0_i32_21 : i32 to vector<8x128xi32>
    %52 = arith.cmpi eq, %42, %51 : vector<8x128xi32>
    %53 = arith.select %52, %50, %43 : vector<8x128xi1>, vector<8x128xf32>
    %c1_i32_22 = arith.constant 1 : i32
    %54 = vector.broadcast %c1_i32_22 : i32 to vector<8x128xi32>
    %55 = arith.cmpi eq, %42, %54 : vector<8x128xi32>
    %56 = arith.select %55, %50, %53 : vector<8x128xi1>, vector<8x128xf32>
    %c2_i32_23 = arith.constant 2 : i32
    %57 = vector.broadcast %c2_i32_23 : i32 to vector<8x128xi32>
    %58 = arith.cmpi eq, %42, %57 : vector<8x128xi32>
    %59 = arith.mulf %41, %41 : vector<8x128xf32>
    %60 = arith.select %58, %59, %56 : vector<8x128xi1>, vector<8x128xf32>
    %c127_i32_24 = arith.constant 127 : i32
    %61 = tpu.dynamic_rotate %41 by %c127_i32_24 dim 1 : vector<8x128xf32>, i32 -> vector<8x128xf32>
    %c3_i32_25 = arith.constant 3 : i32
    %62 = vector.broadcast %c3_i32_25 : i32 to vector<8x128xi32>
    %63 = arith.cmpi eq, %42, %62 : vector<8x128xi32>
    %64 = arith.addf %41, %61 : vector<8x128xf32>
    %65 = arith.select %63, %64, %60 : vector<8x128xi1>, vector<8x128xf32>
    %c5_i32_26 = arith.constant 5 : i32
    %66 = vector.broadcast %c5_i32_26 : i32 to vector<8x128xi32>
    %67 = arith.cmpi eq, %42, %66 : vector<8x128xi32>
    %68 = arith.mulf %41, %61 : vector<8x128xf32>
    %69 = arith.select %67, %68, %65 : vector<8x128xi1>, vector<8x128xf32>
    %c7_i32 = arith.constant 7 : i32
    %70 = tpu.dynamic_rotate %69 by %c7_i32 dim 1 : vector<8x128xf32>, i32 -> vector<8x128xf32>
    %71 = arith.addf %33, %70 : vector<8x128xf32>
    %c0_27 = arith.constant 0 : index
    %c0_28 = arith.constant 0 : index
    %72 = vector.load %arg7[%c0_27, %c0_28] : memref<128x128xf32, #tpu.memory_space<vmem>>, vector<128x128xf32>
    %cst_29 = arith.constant dense<0.000000e+00> : vector<8x128xf32>
    %73 = tpu.matmul %71, %72, %cst_29 {dimension_numbers = #tpu.dot_dimension_numbers<[1], [0], [0], [1], [0, 0, 1, 1], [], []>} : vector<8x128xf32>, vector<128x128xf32>, vector<8x128xf32> -> vector<8x128xf32>
    %c0_30 = arith.constant 0 : index
    %c0_31 = arith.constant 0 : index
    %74 = vector.load %arg8[%c0_30, %c0_31] : memref<10x128xf32, #tpu.memory_space<vmem>>, vector<10x128xf32>
    %cst_32 = arith.constant dense<0.000000e+00> : vector<8x128xf32>
    %75 = tpu.matmul %0, %74, %cst_32 {dimension_numbers = #tpu.dot_dimension_numbers<[1], [0], [0], [1], [0, 0, 1, 1], [], []>} : vector<8x10xf32>, vector<10x128xf32>, vector<8x128xf32> -> vector<8x128xf32>
    %76 = arith.addf %73, %75 : vector<8x128xf32>
    %c0_33 = arith.constant 0 : index
    %c0_34 = arith.constant 0 : index
    %77 = vector.load %arg9[%c0_33, %c0_34] : memref<1x128xf32, #tpu.memory_space<vmem>>, vector<1x128xf32>
    %78 = vector.broadcast %77 : vector<1x128xf32> to vector<8x128xf32>
    %79 = arith.addf %76, %78 : vector<8x128xf32>
    %80 = vector.extract_strided_slice %79 {offsets = [0, 0], sizes = [8, 1], strides = [1, 1]} : vector<8x128xf32> to vector<8x1xf32>
    %c0_35 = arith.constant 0 : index
    %c0_36 = arith.constant 0 : index
    %81 = vector.load %arg10[%c0_35, %c0_36] : memref<8x1xf32, #tpu.memory_space<vmem>>, vector<8x1xf32>
    tpu.vector_store %arg10[%c0_35, %c0_36], %80 {strides = array<i32>} : memref<8x1xf32, #tpu.memory_space<vmem>>, vector<8x1xf32>,
    return
  }
  func.func @transform_0(%arg0: i32) -> (i32, i32) {
    %c0_i32 = arith.constant 0 : i32
    %c0_i32_0 = arith.constant 0 : i32
    return %arg0, %c0_i32 : i32, i32
  }
  func.func @transform_1(%arg0: i32) -> (i32, i32) {
    %c0_i32 = arith.constant 0 : i32
    %c0_i32_0 = arith.constant 0 : i32
    %c0_i32_1 = arith.constant 0 : i32
    return %c0_i32, %c0_i32_0 : i32, i32
  }
  func.func @transform_2(%arg0: i32) -> (i32, i32) {
    %c0_i32 = arith.constant 0 : i32
    %c0_i32_0 = arith.constant 0 : i32
    %c0_i32_1 = arith.constant 0 : i32
    return %c0_i32, %c0_i32_0 : i32, i32
  }
  func.func @transform_3(%arg0: i32) -> (i32, i32) {
    %c0_i32 = arith.constant 0 : i32
    %c0_i32_0 = arith.constant 0 : i32
    %c0_i32_1 = arith.constant 0 : i32
    return %c0_i32, %c0_i32_0 : i32, i32
  }
  func.func @transform_4(%arg0: i32) -> (i32, i32) {
    %c0_i32 = arith.constant 0 : i32
    %c0_i32_0 = arith.constant 0 : i32
    %c0_i32_1 = arith.constant 0 : i32
    return %c0_i32, %c0_i32_0 : i32, i32
  }
  func.func @transform_5(%arg0: i32) -> (i32, i32) {
    %c0_i32 = arith.constant 0 : i32
    %c0_i32_0 = arith.constant 0 : i32
    %c0_i32_1 = arith.constant 0 : i32
    return %c0_i32, %c0_i32_0 : i32, i32
  }
  func.func @transform_6(%arg0: i32) -> (i32, i32) {
    %c0_i32 = arith.constant 0 : i32
    %c0_i32_0 = arith.constant 0 : i32
    %c0_i32_1 = arith.constant 0 : i32
    return %c0_i32, %c0_i32_0 : i32, i32
  }
  func.func @transform_7(%arg0: i32) -> (i32, i32) {
    %c0_i32 = arith.constant 0 : i32
    %c0_i32_0 = arith.constant 0 : i32
    %c0_i32_1 = arith.constant 0 : i32
    return %c0_i32, %c0_i32_0 : i32, i32
  }
  func.func @transform_8(%arg0: i32) -> (i32, i32) {
    %c0_i32 = arith.constant 0 : i32
    %c0_i32_0 = arith.constant 0 : i32
    %c0_i32_1 = arith.constant 0 : i32
    return %c0_i32, %c0_i32_0 : i32, i32
  }
  func.func @transform_9(%arg0: i32) -> (i32, i32) {
    %c0_i32 = arith.constant 0 : i32
    %c0_i32_0 = arith.constant 0 : i32
    return %arg0, %c0_i32 : i32, i32
  }
}

</mosaic_0001>

<llo_original>
// kernel: tpu_custom_call.1
$region0: #{tpu_custom_call.1}
  #allocation0 [shape = 'u32[]', space=smem, size = 0x4, offset = 0x4, fixed_abs, tag = 'smem constant byte address 0x4 - core index']
  #allocation1 [shape = 'u32[144,128]{1,0:T(1,128)}', space=vmem, size = 0x12000, scoped, tag = 'internal scratch']
  %s0 = inlined_call_operand.hbm [shape: f32[8,10], index: 0, kind: input, shape index: {}]
  %s1 = inlined_call_operand.hbm [shape: f32[10,128], index: 1, kind: input, shape index: {}]
  %s2 = inlined_call_operand.vmem [shape: f32[1,128], index: 2, kind: input, shape index: {}]
  %s3 = inlined_call_operand.hbm [shape: f32[128,128], index: 3, kind: input, shape index: {}]
  %s4 = inlined_call_operand.hbm [shape: f32[10,128], index: 4, kind: input, shape index: {}]
  %s5 = inlined_call_operand.vmem [shape: f32[1,128], index: 5, kind: input, shape index: {}]
  %s6 = inlined_call_operand.hbm [shape: f32[128,128], index: 6, kind: input, shape index: {}]
  %s7 = inlined_call_operand.vmem [shape: f32[10,128], index: 7, kind: input, shape index: {}]
  %s8 = inlined_call_operand.vmem [shape: f32[1,128], index: 8, kind: input, shape index: {}]
  %s9 = inlined_call_operand.vmem [shape: f32[8,1], index: 9, kind: output, shape index: {}]
  %s10 = sld [smem:[#allocation0]]
  $region66: #{tpu_custom_call.1} parent=0
    _
  %s12 = ssub.s32 1, %s10
  %s13 = scalar_select 0, %s12, %s10
  $region1: #{tpu_custom_call.1} parent=0
    #allocation2 [shape = 'u8[4096]{0}', space=vmem, size = 0x1000, scoped, tag = 'input window, operand 0, single buffered']
    #allocation3 [shape = 's32[1]{0}', space=sflag, size = 0x4, scoped, tag = 'scoped memory for tpu_custom_call.1']
    #allocation4 [shape = 'u8[8192]{0}', space=vmem, size = 0x2000, scoped, tag = 'input window, operand 1, single buffered']
    #allocation5 [shape = 's32[1]{0}', space=sflag, size = 0x4, scoped, tag = 'scoped memory for tpu_custom_call.1']
    #allocation6 [shape = 'u8[65536]{0}', space=vmem, size = 0x10000, scoped, tag = 'input window, operand 3, single buffered']
    #allocation7 [shape = 'u8[8192]{0}', space=vmem, size = 0x2000, scoped, tag = 'input window, operand 4, single buffered']
    #allocation8 [shape = 's32[1]{0}', space=sflag, size = 0x4, scoped, tag = 'scoped memory for tpu_custom_call.1']
    #allocation9 [shape = 'u8[65536]{0}', space=vmem, size = 0x10000, scoped, tag = 'input window, operand 6, single buffered']
    %14 = vsyncpa [#allocation3], 0
    %15 = vsyncpa [#allocation5], 0
    %16 = vsyncpa [#allocation8], 0
    // Predicated region
    $region2: #{tpu_custom_call.1} parent=1 // pred_check
      _
    $region3: #{tpu_custom_call.1} parent=1 // pred_check_branch
      %18 = sbr.rel (0) target = $region5
    $region4: #{tpu_custom_call.1} parent=1 // pred_region
      %s20 = ssub.s32 128, 128
      %21 = vsyncadd [#allocation3], %s20
      %s23 = sshll.u32 [#allocation2], 4
      %s24 = int_to_ptr.vmem [resolvable:$true] %s23
      %26 = dma.hbm_to_vmem [thread:$0]  %s0, 128, %s24, [#allocation3]
    $region5: #{tpu_custom_call.1} parent=1 // pred_fallthru
      _
    // Predicated region
    $region6: #{tpu_custom_call.1} parent=1 // pred_check
      _
    $region7: #{tpu_custom_call.1} parent=1 // pred_check_branch
      %28 = sbr.rel (0) target = $region9
    $region8: #{tpu_custom_call.1} parent=1 // pred_region
      %s30 = ssub.s32 256, 256
      %31 = vsyncadd [#allocation5], %s30
      %s32 = sshll.u32 [#allocation4], 4
      %s33 = int_to_ptr.vmem [resolvable:$true] %s32
      %38 = dma.hbm_to_vmem [thread:$0]  %s1, 256, %s33, [#allocation5], 128, 128, 8
    $region9: #{tpu_custom_call.1} parent=1 // pred_fallthru
      _
    // Predicated region
    $region10: #{tpu_custom_call.1} parent=1 // pred_check
      _
    $region11: #{tpu_custom_call.1} parent=1 // pred_check_branch
      %40 = sbr.rel (0) target = $region13
    $region12: #{tpu_custom_call.1} parent=1 // pred_region
      _
    $region13: #{tpu_custom_call.1} parent=1 // pred_fallthru
      _
    // Predicated region
    $region14: #{tpu_custom_call.1} parent=1 // pred_check
      _
    $region15: #{tpu_custom_call.1} parent=1 // pred_check_branch
      %42 = sbr.rel (0) target = $region17
    $region16: #{tpu_custom_call.1} parent=1 // pred_region
      %s44 = ssub.s32 2048, 2048
      %45 = vsyncadd [#allocation5], %s44
      %s46 = sshll.u32 [#allocation6], 4
      %s47 = int_to_ptr.vmem [resolvable:$true] %s46
      %52 = dma.hbm_to_vmem [thread:$0]  %s3, 2048, %s47, [#allocation5], 128, 128, 8
    $region17: #{tpu_custom_call.1} parent=1 // pred_fallthru
      _
    // Predicated region
    $region18: #{tpu_custom_call.1} parent=1 // pred_check
      _
    $region19: #{tpu_custom_call.1} parent=1 // pred_check_branch
      %54 = sbr.rel (0) target = $region21
    $region20: #{tpu_custom_call.1} parent=1 // pred_region
      %s56 = ssub.s32 256, 256
      %57 = vsyncadd [#allocation8], %s56
      %s58 = sshll.u32 [#allocation7], 4
      %s59 = int_to_ptr.vmem [resolvable:$true] %s58
      %64 = dma.hbm_to_vmem [thread:$0]  %s4, 256, %s59, [#allocation8], 128, 128, 8
    $region21: #{tpu_custom_call.1} parent=1 // pred_fallthru
      _
    // Predicated region
    $region22: #{tpu_custom_call.1} parent=1 // pred_check
      _
    $region23: #{tpu_custom_call.1} parent=1 // pred_check_branch
      %66 = sbr.rel (0) target = $region25
    $region24: #{tpu_custom_call.1} parent=1 // pred_region
      _
    $region25: #{tpu_custom_call.1} parent=1 // pred_fallthru
      _
    // Predicated region
    $region26: #{tpu_custom_call.1} parent=1 // pred_check
      _
    $region27: #{tpu_custom_call.1} parent=1 // pred_check_branch
      %68 = sbr.rel (0) target = $region29
    $region28: #{tpu_custom_call.1} parent=1 // pred_region
      %s70 = ssub.s32 2048, 2048
      %71 = vsyncadd [#allocation8], %s70
      %s72 = sshll.u32 [#allocation9], 4
      %s73 = int_to_ptr.vmem [resolvable:$true] %s72
      %78 = dma.hbm_to_vmem [thread:$0]  %s6, 2048, %s73, [#allocation8], 128, 128, 8
    $region29: #{tpu_custom_call.1} parent=1 // pred_fallthru
      _
    // Predicated region
    $region30: #{tpu_custom_call.1} parent=1 // pred_check
      _
    $region31: #{tpu_custom_call.1} parent=1 // pred_check_branch
      %80 = sbr.rel (0) target = $region33
    $region32: #{tpu_custom_call.1} parent=1 // pred_region
      _
    $region33: #{tpu_custom_call.1} parent=1 // pred_fallthru
      _
    // Predicated region
    $region34: #{tpu_custom_call.1} parent=1 // pred_check
      _
    $region35: #{tpu_custom_call.1} parent=1 // pred_check_branch
      %82 = sbr.rel (0) target = $region37
    $region36: #{tpu_custom_call.1} parent=1 // pred_region
      _
    $region37: #{tpu_custom_call.1} parent=1 // pred_fallthru
      _
    // Predicated region
    $region38: #{tpu_custom_call.1} parent=1 // pred_check
      _
    $region39: #{tpu_custom_call.1} parent=1 // pred_check_branch
      %84 = sbr.rel (0) target = $region41
    $region40: #{tpu_custom_call.1} parent=1 // pred_region
      %85 = dma.done [#allocation3], 128
    $region41: #{tpu_custom_call.1} parent=1 // pred_fallthru
      _
    // Predicated region
    $region42: #{tpu_custom_call.1} parent=1 // pred_check
      _
    $region43: #{tpu_custom_call.1} parent=1 // pred_check_branch
      %87 = sbr.rel (0) target = $region45
    $region44: #{tpu_custom_call.1} parent=1 // pred_region
      %88 = dma.done [#allocation5], 256
    $region45: #{tpu_custom_call.1} parent=1 // pred_fallthru
      _
    // Predicated region
    $region46: #{tpu_custom_call.1} parent=1 // pred_check
      _
    $region47: #{tpu_custom_call.1} parent=1 // pred_check_branch
      %90 = sbr.rel (0) target = $region49
    $region48: #{tpu_custom_call.1} parent=1 // pred_region
      %91 = dma.done [#allocation5], 2048
    $region49: #{tpu_custom_call.1} parent=1 // pred_fallthru
      _
    // Predicated region
    $region50: #{tpu_custom_call.1} parent=1 // pred_check
      _
    $region51: #{tpu_custom_call.1} parent=1 // pred_check_branch
      %93 = sbr.rel (0) target = $region53
    $region52: #{tpu_custom_call.1} parent=1 // pred_region
      %94 = dma.done [#allocation8], 256
    $region53: #{tpu_custom_call.1} parent=1 // pred_fallthru
      _
    // Predicated region
    $region54: #{tpu_custom_call.1} parent=1 // pred_check
      _
    $region55: #{tpu_custom_call.1} parent=1 // pred_check_branch
      %96 = sbr.rel (0) target = $region57
    $region56: #{tpu_custom_call.1} parent=1 // pred_region
      %97 = dma.done [#allocation8], 2048
    $region57: #{tpu_custom_call.1} parent=1 // pred_fallthru
      _
    %v98 = vld [vmem:[#allocation2] sm:$0xff]
    %v99 = vld [vmem:[#allocation4] sm:$0xff]
    %v100 = vld [vmem:[#allocation4 + $0x8] sm:$0x3]
    %v101 = vld [vmem:[%s2] sm:$0x1]
    %v103 = vlaneseq
    %v104 = vshrl.u32 %v103, 7
    %v105 = vsub.s32 0, %v104
    %v106 = vrot.slane %v101, %v105
    %vm108 = vcmask 80896
    %v110 = vsel %vm108, %v98, 0
    %vm112 = vcmask 1041408
    %v114 = vsel %vm112, %v100, 0
    %116 = vmatprep.subr.mxu0 0.0
    %117 = vmatpush1.msra.mxu0 %v99
    %118 = vmatprep.subr.mxu0 0.0
    %119 = vmatpush1.msra.mxu0 %v114
    %120 = vmatprep.subr.mxu0 0.0
    %121 = vmatpush1.msra.mxu0 0.0
    %122 = vmatprep.subr.mxu0 0.0
    %123 = vmatpush1.msra.mxu0 0.0
    %124 = vmatprep.subr.mxu0 0.0
    %125 = vmatpush1.msra.mxu0 0.0
    %126 = vmatprep.subr.mxu0 0.0
    %127 = vmatpush1.msra.mxu0 0.0
    %128 = vmatprep.subr.mxu0 0.0
    %129 = vmatpush1.msra.mxu0 0.0
    %130 = vmatprep.subr.mxu0 0.0
    %131 = vmatpush1.msra.mxu0 0.0
    %132 = vmatprep.subr.mxu0 0.0
    %133 = vmatpush1.msra.mxu0 0.0
    %134 = vmatprep.subr.mxu0 0.0
    %135 = vmatpush1.msra.mxu0 0.0
    %136 = vmatprep.subr.mxu0 0.0
    %137 = vmatpush1.msra.mxu0 0.0
    %138 = vmatprep.subr.mxu0 0.0
    %139 = vmatpush1.msra.mxu0 0.0
    %140 = vmatprep.subr.mxu0 0.0
    %141 = vmatpush1.msra.mxu0 0.0
    %142 = vmatprep.subr.mxu0 0.0
    %143 = vmatpush1.msra.mxu0 0.0
    %144 = vmatprep.subr.mxu0 0.0
    %145 = vmatpush1.msra.mxu0 0.0
    %146 = vmatprep.subr.mxu0 0.0
    %147 = vmatpush1.msra.mxu0 0.0
    %148 = vmatprep.subr.mxu0 0.0
    %149 = vmatpush1.msra.mxu0 0.0
    %150 = vmatprep.subr.mxu0 0.0
    %151 = vmatpush1.msra.mxu0 0.0
    %152 = vmatprep.subr.mxu0 0.0
    %153 = vmatpush1.msra.mxu0 0.0
    %154 = vmatprep.subr.mxu0 0.0
    %155 = vmatpush1.msra.mxu0 0.0
    %156 = vmatprep.subr.mxu0 0.0
    %157 = vmatpush1.msra.mxu0 0.0
    %158 = vmatprep.subr.mxu0 0.0
    %159 = vmatpush1.msra.mxu0 0.0
    %160 = vmatprep.subr.mxu0 0.0
    %161 = vmatpush1.msra.mxu0 0.0
    %162 = vmatprep.subr.mxu0 0.0
    %163 = vmatpush1.msra.mxu0 0.0
    %164 = vmatprep.subr.mxu0 0.0
    %165 = vmatpush1.msra.mxu0 0.0
    %166 = vmatprep.subr.mxu0 0.0
    %167 = vmatpush1.msra.mxu0 0.0
    %168 = vmatprep.subr.mxu0 0.0
    %169 = vmatpush1.msra.mxu0 0.0
    %170 = vmatprep.subr.mxu0 0.0
    %171 = vmatpush1.msra.mxu0 0.0
    %172 = vmatprep.subr.mxu0 0.0
    %173 = vmatpush1.msra.mxu0 0.0
    %174 = vmatprep.subr.mxu0 0.0
    %175 = vmatpush1.msra.mxu0 0.0
    %176 = vmatprep.subr.mxu0 0.0
    %177 = vmatpush1.msra.mxu0 0.0
    %178 = vmatprep.subr.mxu0 0.0
    %179 = vmatpush1.msra.mxu0 0.0
    %180 = vmatprep.mubr.f32.mxu0 0.0
    %181 = vmatmul.mubr.f32.gmra.mrb[0].mxu0 %v110
    %v182 = vpop.f32.mrb[0].mxu0
    %v183 = vadd.f32 %v106, %v182
    %v184 = vpop.f32.mrb[0].mxu0
    %185 = vdwg.mxu0
    %v186 = vlaneseq
    %v187 = vand.u32 %v186, 127
    %vm188 = vcmp.eq.s32.totalorder %v187, 1
    %v189 = vsel %vm188, 1.5707964, 0.0
    %v190 = vadd.f32 %v183, %v189
    %v191 = vand.u32 2147483647, %v190
    %vm192 = vcmp.le.f32.partialorder %v191, 0.7853982
    %vm193 = vcmp.lt.s32.totalorder %v190, 0
    %v194 = vand.u32 %v190, 2139095040
    %v195 = vshrl.u32 %v194, 23
    %v196 = vsub.s32 %v195, 127
    %v197 = vand.u32 2147483647, %v190
    %v198 = vand.u32 %v197, 8388607
    %v199 = vor.u32 %v198, 8388608
    %v200 = vsub.s32 0, %v199
    %v201 = vadd.s32 %v196, 1
    %vm202 = vcmp.gt.s32.totalorder %v201, 0
    %v203 = vsel %vm202, %v201, 0
    %v204 = vshrl.u32 %v203, 5
    %v205 = vand.u32 %v203, 31
    %v206 = vsub.s32 32, %v205
    %v207 = vshrl.u32 683565275, %v206
    %v208 = vshll.u32 683565275, %v205
    %v209 = vshrl.u32 2475754826, %v206
    %v210 = vor.u32 %v208, %v209
    %v211 = vshll.u32 2475754826, %v205
    %v212 = vshrl.u32 2131351028, %v206
    %v213 = vor.u32 %v211, %v212
    %v214 = vshll.u32 2131351028, %v205
    %v215 = vshrl.u32 2102212464, %v206
    %v216 = vor.u32 %v214, %v215
    %v217 = vshll.u32 2102212464, %v205
    %v218 = vshrl.u32 920167782, %v206
    %v219 = vor.u32 %v217, %v218
    %v220 = vshll.u32 920167782, %v205
    %v221 = vshrl.u32 1326507024, %v206
    %v222 = vor.u32 %v220, %v221
    %vm223 = vcmp.lt.s32.totalorder %v204, 1
    %vm224 = vcmp.lt.s32.totalorder %v204, 2
    %vm225 = vcmp.lt.s32.totalorder %v204, 3
    %vm226 = vcmp.lt.s32.totalorder %v204, 4
    %v227 = vsel %vm223, %v207, %v210
    %v228 = vsel %vm226, %v216, 2102212464
    %v229 = vsel %vm225, %v213, %v228
    %v230 = vsel %vm224, %v227, %v229
    %v231 = vsel %vm223, %v210, %v213
    %v232 = vsel %vm226, %v219, 920167782
    %v233 = vsel %vm225, %v216, %v232
    %v234 = vsel %vm224, %v231, %v233
    %v235 = vsel %vm223, %v213, %v216
    %v236 = vsel %vm226, %v222, 1326507024
    %v237 = vsel %vm225, %v219, %v236
    %v238 = vsel %vm224, %v235, %v237
    %v239 = vshll.u32 %v199, 8
    %v240 = vmul.u32.u64.compose %v239, %v238
    %v241 = vextract.low.u32 %v240
    %v242 = vextract.high.u32 %v240
    %v243 = vmul.u32.u64.compose %v239, %v234
    %v244 = vextract.low.u32 %v243
    %v245 = vextract.high.u32 %v243
    %v246 = vmul.u32 %v239, %v230
    %v247 = vadd.s32 %v242, %v244
    %vm248 = vc.u32 %v242, %v244
    %v249 = vadd.s32 %v245, 1
    %v250 = vsel %vm248, %v249, %v245
    %v251 = vadd.s32 %v246, %v250
    %v252 = vadd.s32 %v251, 536870912
    %v253 = vshrl.u32 %v252, 30
    %v254 = vshll.u32 %v253, 30
    %v255 = vsub.s32 %v251, %v254
    %vm256 = vcmp.lt.s32.totalorder %v255, 0
    %v257 = vsub.s32 0, %v255
    %v258 = vsel %vm256, %v257, %v255
    %v259 = vclz %v258
    %v260 = vsub.s32 %v259, 2
    %vm261 = vcmp.gt.s32.totalorder 0, %v260
    %v262 = vsel %vm261, 0, %v260
    %v263 = vsub.s32 32, %v262
    %v264 = vshll.u32 %v255, %v262
    %v265 = vshrl.u32 %v247, %v263
    %v266 = vor.u32 %v264, %v265
    %v267 = vsub.s32 4294967266, %v262
    %v268 = vadd.s32 %v267, 127
    %v269 = vshll.u32 %v268, 23
    %v270 = vor.u32 4788187, %v269
    %v271 = vand.u32 2147483647, %v270
    %v273 = vcvt.s32.f32 %v266
    %v274 = vmul.f32 %v273, %v271
    %v275 = vxor.u32 %v274, 2147483648
    %v276 = vsel %vm193, %v275, %v274
    %v277 = vsub.s32 4, %v253
    %v278 = vsel %vm193, %v277, %v253
    %v279 = vsel %vm192, %v190, %v276
    %v280 = vsel %vm192, 0, %v278
    %v281 = vcosq.f32.pop %v279
    %v282 = vsinq.f32.pop %v279
    %vm283 = vweird.f32 %v190
    %v284 = vadd.s32 %v280, 3
    %v285 = vand.u32 %v284, 3
    %vm286 = vcmp.lt.s32.totalorder %v285, 2
    %vm287 = vcmp.eq.s32.totalorder %v285, 0
    %v288 = vxor.u32 %v282, 2147483648
    %v289 = vsel %vm287, %v281, %v288
    %vm290 = vcmp.eq.s32.totalorder %v285, 2
    %v291 = vxor.u32 %v281, 2147483648
    %v292 = vsel %vm290, %v291, %v282
    %v293 = vsel %vm286, %v289, %v292
    %v294 = vsel %vm283, nan, %v293
    %vm295 = vcmp.eq.s32.totalorder %v187, 0
    %v296 = vsel %vm295, %v294, 0.0
    %v297 = vsel %vm188, %v294, %v296
    %vm298 = vcmp.eq.s32.totalorder %v187, 2
    %v299 = vmul.f32 %v183, %v183
    %v300 = vsel %vm298, %v299, %v297
    %301 = vrot.lane.b32.xlu0 %v183, 127
    %v302 = vpop.permute.xlu0 %301
    %vm303 = vcmp.eq.s32.totalorder %v187, 3
    %v304 = vadd.f32 %v183, %v302
    %v305 = vsel %vm303, %v304, %v300
    %vm306 = vcmp.eq.s32.totalorder %v187, 5
    %v307 = vmul.f32 %v183, %v302
    %v308 = vsel %vm306, %v307, %v305
    %v309 = vld [vmem:[#allocation6] sm:$0xff]
    %v310 = vld [vmem:[#allocation6 + $0x8] sm:$0xff]
    %v311 = vld [vmem:[#allocation6 + $0x10] sm:$0xff]
    %v312 = vld [vmem:[#allocation6 + $0x18] sm:$0xff]
    %v313 = vld [vmem:[#allocation6 + $0x20] sm:$0xff]
    %v314 = vld [vmem:[#allocation6 + $0x28] sm:$0xff]
    %v315 = vld [vmem:[#allocation6 + $0x30] sm:$0xff]
    %v316 = vld [vmem:[#allocation6 + $0x38] sm:$0xff]
    %v317 = vld [vmem:[#allocation6 + $0x40] sm:$0xff]
    %v318 = vld [vmem:[#allocation6 + $0x48] sm:$0xff]
    %v319 = vld [vmem:[#allocation6 + $0x50] sm:$0xff]
    %v320 = vld [vmem:[#allocation6 + $0x58] sm:$0xff]
    %v321 = vld [vmem:[#allocation6 + $0x60] sm:$0xff]
    %v322 = vld [vmem:[#allocation6 + $0x68] sm:$0xff]
    %v323 = vld [vmem:[#allocation6 + $0x70] sm:$0xff]
    %v324 = vld [vmem:[#allocation6 + $0x78] sm:$0xff]
    %v325 = vld [vmem:[#allocation7] sm:$0xff]
    %v326 = vld [vmem:[#allocation7 + $0x8] sm:$0x3]
    %v328 = vsel %vm112, %v326, 0
    %330 = vmatprep.subr.mxu0 0.0
    %331 = vmatpush1.msra.mxu0 %v325
    %332 = vmatprep.subr.mxu0 0.0
    %333 = vmatpush1.msra.mxu0 %v328
    %334 = vmatprep.subr.mxu0 0.0
    %335 = vmatpush1.msra.mxu0 0.0
    %336 = vmatprep.subr.mxu0 0.0
    %337 = vmatpush1.msra.mxu0 0.0
    %338 = vmatprep.subr.mxu0 0.0
    %339 = vmatpush1.msra.mxu0 0.0
    %340 = vmatprep.subr.mxu0 0.0
    %341 = vmatpush1.msra.mxu0 0.0
    %342 = vmatprep.subr.mxu0 0.0
    %343 = vmatpush1.msra.mxu0 0.0
    %344 = vmatprep.subr.mxu0 0.0
    %345 = vmatpush1.msra.mxu0 0.0
    %346 = vmatprep.subr.mxu0 0.0
    %347 = vmatpush1.msra.mxu0 0.0
    %348 = vmatprep.subr.mxu0 0.0
    %349 = vmatpush1.msra.mxu0 0.0
    %350 = vmatprep.subr.mxu0 0.0
    %351 = vmatpush1.msra.mxu0 0.0
    %352 = vmatprep.subr.mxu0 0.0
    %353 = vmatpush1.msra.mxu0 0.0
    %354 = vmatprep.subr.mxu0 0.0
    %355 = vmatpush1.msra.mxu0 0.0
    %356 = vmatprep.subr.mxu0 0.0
    %357 = vmatpush1.msra.mxu0 0.0
    %358 = vmatprep.subr.mxu0 0.0
    %359 = vmatpush1.msra.mxu0 0.0
    %360 = vmatprep.subr.mxu0 0.0
    %361 = vmatpush1.msra.mxu0 0.0
    %362 = vmatprep.subr.mxu0 0.0
    %363 = vmatpush1.msra.mxu0 0.0
    %364 = vmatprep.subr.mxu0 0.0
    %365 = vmatpush1.msra.mxu0 0.0
    %366 = vmatprep.subr.mxu0 0.0
    %367 = vmatpush1.msra.mxu0 0.0
    %368 = vmatprep.subr.mxu0 0.0
    %369 = vmatpush1.msra.mxu0 0.0
    %370 = vmatprep.subr.mxu0 0.0
    %371 = vmatpush1.msra.mxu0 0.0
    %372 = vmatprep.subr.mxu0 0.0
    %373 = vmatpush1.msra.mxu0 0.0
    %374 = vmatprep.subr.mxu0 0.0
    %375 = vmatpush1.msra.mxu0 0.0
    %376 = vmatprep.subr.mxu0 0.0
    %377 = vmatpush1.msra.mxu0 0.0
    %378 = vmatprep.subr.mxu0 0.0
    %379 = vmatpush1.msra.mxu0 0.0
    %380 = vmatprep.subr.mxu0 0.0
    %381 = vmatpush1.msra.mxu0 0.0
    %382 = vmatprep.subr.mxu0 0.0
    %383 = vmatpush1.msra.mxu0 0.0
    %384 = vmatprep.subr.mxu0 0.0
    %385 = vmatpush1.msra.mxu0 0.0
    %386 = vmatprep.subr.mxu0 0.0
    %387 = vmatpush1.msra.mxu0 0.0
    %388 = vmatprep.subr.mxu0 0.0
    %389 = vmatpush1.msra.mxu0 0.0
    %390 = vmatprep.subr.mxu0 0.0
    %391 = vmatpush1.msra.mxu0 0.0
    %392 = vmatprep.subr.mxu0 0.0
    %393 = vmatpush1.msra.mxu0 0.0
    %394 = vmatprep.mubr.f32.mxu0 0.0
    %395 = vmatmul.mubr.f32.gmra.mrb[0].mxu0 %v110
    %v396 = vpop.f32.mrb[0].mxu0
    %v397 = vadd.f32 0.0, %v396
    %v398 = vpop.f32.mrb[0].mxu0
    %399 = vdwg.mxu0
    %400 = vmatprep.subr.mxu0 0.0
    %401 = vmatpush1.msra.mxu0 %v309
    %402 = vmatprep.subr.mxu0 0.0
    %403 = vmatpush1.msra.mxu0 %v310
    %404 = vmatprep.subr.mxu0 0.0
    %405 = vmatpush1.msra.mxu0 %v311
    %406 = vmatprep.subr.mxu0 0.0
    %407 = vmatpush1.msra.mxu0 %v312
    %408 = vmatprep.subr.mxu0 0.0
    %409 = vmatpush1.msra.mxu0 %v313
    %410 = vmatprep.subr.mxu0 0.0
    %411 = vmatpush1.msra.mxu0 %v314
    %412 = vmatprep.subr.mxu0 0.0
    %413 = vmatpush1.msra.mxu0 %v315
    %414 = vmatprep.subr.mxu0 0.0
    %415 = vmatpush1.msra.mxu0 %v316
    %416 = vmatprep.subr.mxu0 0.0
    %417 = vmatpush1.msra.mxu0 %v317
    %418 = vmatprep.subr.mxu0 0.0
    %419 = vmatpush1.msra.mxu0 %v318
    %420 = vmatprep.subr.mxu0 0.0
    %421 = vmatpush1.msra.mxu0 %v319
    %422 = vmatprep.subr.mxu0 0.0
    %423 = vmatpush1.msra.mxu0 %v320
    %424 = vmatprep.subr.mxu0 0.0
    %425 = vmatpush1.msra.mxu0 %v321
    %426 = vmatprep.subr.mxu0 0.0
    %427 = vmatpush1.msra.mxu0 %v322
    %428 = vmatprep.subr.mxu0 0.0
    %429 = vmatpush1.msra.mxu0 %v323
    %430 = vmatprep.subr.mxu0 0.0
    %431 = vmatpush1.msra.mxu0 %v324
    %432 = vmatprep.subr.mxu0 0.0
    %433 = vmatpush1.msra.mxu0 0.0
    %434 = vmatprep.subr.mxu0 0.0
    %435 = vmatpush1.msra.mxu0 0.0
    %436 = vmatprep.subr.mxu0 0.0
    %437 = vmatpush1.msra.mxu0 0.0
    %438 = vmatprep.subr.mxu0 0.0
    %439 = vmatpush1.msra.mxu0 0.0
    %440 = vmatprep.subr.mxu0 0.0
    %441 = vmatpush1.msra.mxu0 0.0
    %442 = vmatprep.subr.mxu0 0.0
    %443 = vmatpush1.msra.mxu0 0.0
    %444 = vmatprep.subr.mxu0 0.0
    %445 = vmatpush1.msra.mxu0 0.0
    %446 = vmatprep.subr.mxu0 0.0
    %447 = vmatpush1.msra.mxu0 0.0
    %448 = vmatprep.subr.mxu0 0.0
    %449 = vmatpush1.msra.mxu0 0.0
    %450 = vmatprep.subr.mxu0 0.0
    %451 = vmatpush1.msra.mxu0 0.0
    %452 = vmatprep.subr.mxu0 0.0
    %453 = vmatpush1.msra.mxu0 0.0
    %454 = vmatprep.subr.mxu0 0.0
    %455 = vmatpush1.msra.mxu0 0.0
    %456 = vmatprep.subr.mxu0 0.0
    %457 = vmatpush1.msra.mxu0 0.0
    %458 = vmatprep.subr.mxu0 0.0
    %459 = vmatpush1.msra.mxu0 0.0
    %460 = vmatprep.subr.mxu0 0.0
    %461 = vmatpush1.msra.mxu0 0.0
    %462 = vmatprep.subr.mxu0 0.0
    %463 = vmatpush1.msra.mxu0 0.0
    %464 = vmatprep.mubr.f32.mxu0 0.0
    %465 = vmatmul.mubr.f32.gmra.mrb[0].mxu0 %v308
    %v466 = vpop.f32.mrb[0].mxu0
    %v467 = vadd.f32 %v397, %v466
    %v468 = vpop.f32.mrb[0].mxu0
    %469 = vdwg.mxu0
    %v470 = vld [vmem:[%s5] sm:$0x1]
    %v472 = vlaneseq
    %v473 = vshrl.u32 %v472, 7
    %v474 = vsub.s32 0, %v473
    %v475 = vrot.slane %v470, %v474
    %v477 = vadd.f32 %v467, %v475
    %v478 = vadd.f32 %v477, %v189
    %v479 = vand.u32 2147483647, %v478
    %vm480 = vcmp.le.f32.partialorder %v479, 0.7853982
    %vm481 = vcmp.lt.s32.totalorder %v478, 0
    %v482 = vand.u32 %v478, 2139095040
    %v483 = vshrl.u32 %v482, 23
    %v484 = vsub.s32 %v483, 127
    %v485 = vand.u32 2147483647, %v478
    %v486 = vand.u32 %v485, 8388607
    %v487 = vor.u32 %v486, 8388608
    %v488 = vsub.s32 0, %v487
    %v489 = vadd.s32 %v484, 1
    %vm490 = vcmp.gt.s32.totalorder %v489, 0
    %v491 = vsel %vm490, %v489, 0
    %v492 = vshrl.u32 %v491, 5
    %v493 = vand.u32 %v491, 31
    %v494 = vsub.s32 32, %v493
    %v495 = vshrl.u32 683565275, %v494
    %v496 = vshll.u32 683565275, %v493
    %v497 = vshrl.u32 2475754826, %v494
    %v498 = vor.u32 %v496, %v497
    %v499 = vshll.u32 2475754826, %v493
    %v500 = vshrl.u32 2131351028, %v494
    %v501 = vor.u32 %v499, %v500
    %v502 = vshll.u32 2131351028, %v493
    %v503 = vshrl.u32 2102212464, %v494
    %v504 = vor.u32 %v502, %v503
    %v505 = vshll.u32 2102212464, %v493
    %v506 = vshrl.u32 920167782, %v494
    %v507 = vor.u32 %v505, %v506
    %v508 = vshll.u32 920167782, %v493
    %v509 = vshrl.u32 1326507024, %v494
    %v510 = vor.u32 %v508, %v509
    %vm511 = vcmp.lt.s32.totalorder %v492, 1
    %vm512 = vcmp.lt.s32.totalorder %v492, 2
    %vm513 = vcmp.lt.s32.totalorder %v492, 3
    %vm514 = vcmp.lt.s32.totalorder %v492, 4
    %v515 = vsel %vm511, %v495, %v498
    %v516 = vsel %vm514, %v504, 2102212464
    %v517 = vsel %vm513, %v501, %v516
    %v518 = vsel %vm512, %v515, %v517
    %v519 = vsel %vm511, %v498, %v501
    %v520 = vsel %vm514, %v507, 920167782
    %v521 = vsel %vm513, %v504, %v520
    %v522 = vsel %vm512, %v519, %v521
    %v523 = vsel %vm511, %v501, %v504
    %v524 = vsel %vm514, %v510, 1326507024
    %v525 = vsel %vm513, %v507, %v524
    %v526 = vsel %vm512, %v523, %v525
    %v527 = vshll.u32 %v487, 8
    %v528 = vmul.u32.u64.compose %v527, %v526
    %v529 = vextract.low.u32 %v528
    %v530 = vextract.high.u32 %v528
    %v531 = vmul.u32.u64.compose %v527, %v522
    %v532 = vextract.low.u32 %v531
    %v533 = vextract.high.u32 %v531
    %v534 = vmul.u32 %v527, %v518
    %v535 = vadd.s32 %v530, %v532
    %vm536 = vc.u32 %v530, %v532
    %v537 = vadd.s32 %v533, 1
    %v538 = vsel %vm536, %v537, %v533
    %v539 = vadd.s32 %v534, %v538
    %v540 = vadd.s32 %v539, 536870912
    %v541 = vshrl.u32 %v540, 30
    %v542 = vshll.u32 %v541, 30
    %v543 = vsub.s32 %v539, %v542
    %vm544 = vcmp.lt.s32.totalorder %v543, 0
    %v545 = vsub.s32 0, %v543
    %v546 = vsel %vm544, %v545, %v543
    %v547 = vclz %v546
    %v548 = vsub.s32 %v547, 2
    %vm549 = vcmp.gt.s32.totalorder 0, %v548
    %v550 = vsel %vm549, 0, %v548
    %v551 = vsub.s32 32, %v550
    %v552 = vshll.u32 %v543, %v550
    %v553 = vshrl.u32 %v535, %v551
    %v554 = vor.u32 %v552, %v553
    %v555 = vsub.s32 4294967266, %v550
    %v556 = vadd.s32 %v555, 127
    %v557 = vshll.u32 %v556, 23
    %v558 = vor.u32 4788187, %v557
    %v559 = vand.u32 2147483647, %v558
    %v561 = vcvt.s32.f32 %v554
    %v562 = vmul.f32 %v561, %v559
    %v563 = vxor.u32 %v562, 2147483648
    %v564 = vsel %vm481, %v563, %v562
    %v565 = vsub.s32 4, %v541
    %v566 = vsel %vm481, %v565, %v541
    %v567 = vsel %vm480, %v478, %v564
    %v568 = vsel %vm480, 0, %v566
    %v569 = vcosq.f32.pop %v567
    %v570 = vsinq.f32.pop %v567
    %vm571 = vweird.f32 %v478
    %v572 = vadd.s32 %v568, 3
    %v573 = vand.u32 %v572, 3
    %vm574 = vcmp.lt.s32.totalorder %v573, 2
    %vm575 = vcmp.eq.s32.totalorder %v573, 0
    %v576 = vxor.u32 %v570, 2147483648
    %v577 = vsel %vm575, %v569, %v576
    %vm578 = vcmp.eq.s32.totalorder %v573, 2
    %v579 = vxor.u32 %v569, 2147483648
    %v580 = vsel %vm578, %v579, %v570
    %v581 = vsel %vm574, %v577, %v580
    %v582 = vsel %vm571, nan, %v581
    %v583 = vsel %vm295, %v582, 0.0
    %v584 = vsel %vm188, %v582, %v583
    %v585 = vmul.f32 %v477, %v477
    %v586 = vsel %vm298, %v585, %v584
    %587 = vrot.lane.b32.xlu0 %v477, 127
    %v588 = vpop.permute.xlu0 %587
    %v589 = vadd.f32 %v477, %v588
    %v590 = vsel %vm303, %v589, %v586
    %v591 = vmul.f32 %v477, %v588
    %v592 = vsel %vm306, %v591, %v590
    %593 = vrot.lane.b32.xlu0 %v592, 7
    %v594 = vpop.permute.xlu0 %593
    %v595 = vadd.f32 %v308, %v594
    %v596 = vld [vmem:[#allocation9] sm:$0xff]
    %v597 = vld [vmem:[#allocation9 + $0x8] sm:$0xff]
    %v598 = vld [vmem:[#allocation9 + $0x10] sm:$0xff]
    %v599 = vld [vmem:[#allocation9 + $0x18] sm:$0xff]
    %v600 = vld [vmem:[#allocation9 + $0x20] sm:$0xff]
    %v601 = vld [vmem:[#allocation9 + $0x28] sm:$0xff]
    %v602 = vld [vmem:[#allocation9 + $0x30] sm:$0xff]
    %v603 = vld [vmem:[#allocation9 + $0x38] sm:$0xff]
    %v604 = vld [vmem:[#allocation9 + $0x40] sm:$0xff]
    %v605 = vld [vmem:[#allocation9 + $0x48] sm:$0xff]
    %v606 = vld [vmem:[#allocation9 + $0x50] sm:$0xff]
    %v607 = vld [vmem:[#allocation9 + $0x58] sm:$0xff]
    %v608 = vld [vmem:[#allocation9 + $0x60] sm:$0xff]
    %v609 = vld [vmem:[#allocation9 + $0x68] sm:$0xff]
    %v610 = vld [vmem:[#allocation9 + $0x70] sm:$0xff]
    %v611 = vld [vmem:[#allocation9 + $0x78] sm:$0xff]
    %v612 = vld [vmem:[%s7] sm:$0xff]
    %v613 = vld [vmem:[%s7 + $0x8] sm:$0x3]
    %v615 = vsel %vm112, %v613, 0
    %617 = vmatprep.subr.mxu0 0.0
    %618 = vmatpush1.msra.mxu0 %v612
    %619 = vmatprep.subr.mxu0 0.0
    %620 = vmatpush1.msra.mxu0 %v615
    %621 = vmatprep.subr.mxu0 0.0
    %622 = vmatpush1.msra.mxu0 0.0
    %623 = vmatprep.subr.mxu0 0.0
    %624 = vmatpush1.msra.mxu0 0.0
    %625 = vmatprep.subr.mxu0 0.0
    %626 = vmatpush1.msra.mxu0 0.0
    %627 = vmatprep.subr.mxu0 0.0
    %628 = vmatpush1.msra.mxu0 0.0
    %629 = vmatprep.subr.mxu0 0.0
    %630 = vmatpush1.msra.mxu0 0.0
    %631 = vmatprep.subr.mxu0 0.0
    %632 = vmatpush1.msra.mxu0 0.0
    %633 = vmatprep.subr.mxu0 0.0
    %634 = vmatpush1.msra.mxu0 0.0
    %635 = vmatprep.subr.mxu0 0.0
    %636 = vmatpush1.msra.mxu0 0.0
    %637 = vmatprep.subr.mxu0 0.0
    %638 = vmatpush1.msra.mxu0 0.0
    %639 = vmatprep.subr.mxu0 0.0
    %640 = vmatpush1.msra.mxu0 0.0
    %641 = vmatprep.subr.mxu0 0.0
    %642 = vmatpush1.msra.mxu0 0.0
    %643 = vmatprep.subr.mxu0 0.0
    %644 = vmatpush1.msra.mxu0 0.0
    %645 = vmatprep.subr.mxu0 0.0
    %646 = vmatpush1.msra.mxu0 0.0
    %647 = vmatprep.subr.mxu0 0.0
    %648 = vmatpush1.msra.mxu0 0.0
    %649 = vmatprep.subr.mxu0 0.0
    %650 = vmatpush1.msra.mxu0 0.0
    %651 = vmatprep.subr.mxu0 0.0
    %652 = vmatpush1.msra.mxu0 0.0
    %653 = vmatprep.subr.mxu0 0.0
    %654 = vmatpush1.msra.mxu0 0.0
    %655 = vmatprep.subr.mxu0 0.0
    %656 = vmatpush1.msra.mxu0 0.0
    %657 = vmatprep.subr.mxu0 0.0
    %658 = vmatpush1.msra.mxu0 0.0
    %659 = vmatprep.subr.mxu0 0.0
    %660 = vmatpush1.msra.mxu0 0.0
    %661 = vmatprep.subr.mxu0 0.0
    %662 = vmatpush1.msra.mxu0 0.0
    %663 = vmatprep.subr.mxu0 0.0
    %664 = vmatpush1.msra.mxu0 0.0
    %665 = vmatprep.subr.mxu0 0.0
    %666 = vmatpush1.msra.mxu0 0.0
    %667 = vmatprep.subr.mxu0 0.0
    %668 = vmatpush1.msra.mxu0 0.0
    %669 = vmatprep.subr.mxu0 0.0
    %670 = vmatpush1.msra.mxu0 0.0
    %671 = vmatprep.subr.mxu0 0.0
    %672 = vmatpush1.msra.mxu0 0.0
    %673 = vmatprep.subr.mxu0 0.0
    %674 = vmatpush1.msra.mxu0 0.0
    %675 = vmatprep.subr.mxu0 0.0
    %676 = vmatpush1.msra.mxu0 0.0
    %677 = vmatprep.subr.mxu0 0.0
    %678 = vmatpush1.msra.mxu0 0.0
    %679 = vmatprep.subr.mxu0 0.0
    %680 = vmatpush1.msra.mxu0 0.0
    %681 = vmatprep.mubr.f32.mxu0 0.0
    %682 = vmatmul.mubr.f32.gmra.mrb[0].mxu0 %v110
    %v683 = vpop.f32.mrb[0].mxu0
    %v684 = vadd.f32 0.0, %v683
    %v685 = vpop.f32.mrb[0].mxu0
    %686 = vdwg.mxu0
    %687 = vmatprep.subr.mxu0 0.0
    %688 = vmatpush1.msra.mxu0 %v596
    %689 = vmatprep.subr.mxu0 0.0
    %690 = vmatpush1.msra.mxu0 %v597
    %691 = vmatprep.subr.mxu0 0.0
    %692 = vmatpush1.msra.mxu0 %v598
    %693 = vmatprep.subr.mxu0 0.0
    %694 = vmatpush1.msra.mxu0 %v599
    %695 = vmatprep.subr.mxu0 0.0
    %696 = vmatpush1.msra.mxu0 %v600
    %697 = vmatprep.subr.mxu0 0.0
    %698 = vmatpush1.msra.mxu0 %v601
    %699 = vmatprep.subr.mxu0 0.0
    %700 = vmatpush1.msra.mxu0 %v602
    %701 = vmatprep.subr.mxu0 0.0
    %702 = vmatpush1.msra.mxu0 %v603
    %703 = vmatprep.subr.mxu0 0.0
    %704 = vmatpush1.msra.mxu0 %v604
    %705 = vmatprep.subr.mxu0 0.0
    %706 = vmatpush1.msra.mxu0 %v605
    %707 = vmatprep.subr.mxu0 0.0
    %708 = vmatpush1.msra.mxu0 %v606
    %709 = vmatprep.subr.mxu0 0.0
    %710 = vmatpush1.msra.mxu0 %v607
    %711 = vmatprep.subr.mxu0 0.0
    %712 = vmatpush1.msra.mxu0 %v608
    %713 = vmatprep.subr.mxu0 0.0
    %714 = vmatpush1.msra.mxu0 %v609
    %715 = vmatprep.subr.mxu0 0.0
    %716 = vmatpush1.msra.mxu0 %v610
    %717 = vmatprep.subr.mxu0 0.0
    %718 = vmatpush1.msra.mxu0 %v611
    %719 = vmatprep.subr.mxu0 0.0
    %720 = vmatpush1.msra.mxu0 0.0
    %721 = vmatprep.subr.mxu0 0.0
    %722 = vmatpush1.msra.mxu0 0.0
    %723 = vmatprep.subr.mxu0 0.0
    %724 = vmatpush1.msra.mxu0 0.0
    %725 = vmatprep.subr.mxu0 0.0
    %726 = vmatpush1.msra.mxu0 0.0
    %727 = vmatprep.subr.mxu0 0.0
    %728 = vmatpush1.msra.mxu0 0.0
    %729 = vmatprep.subr.mxu0 0.0
    %730 = vmatpush1.msra.mxu0 0.0
    %731 = vmatprep.subr.mxu0 0.0
    %732 = vmatpush1.msra.mxu0 0.0
    %733 = vmatprep.subr.mxu0 0.0
    %734 = vmatpush1.msra.mxu0 0.0
    %735 = vmatprep.subr.mxu0 0.0
    %736 = vmatpush1.msra.mxu0 0.0
    %737 = vmatprep.subr.mxu0 0.0
    %738 = vmatpush1.msra.mxu0 0.0
    %739 = vmatprep.subr.mxu0 0.0
    %740 = vmatpush1.msra.mxu0 0.0
    %741 = vmatprep.subr.mxu0 0.0
    %742 = vmatpush1.msra.mxu0 0.0
    %743 = vmatprep.subr.mxu0 0.0
    %744 = vmatpush1.msra.mxu0 0.0
    %745 = vmatprep.subr.mxu0 0.0
    %746 = vmatpush1.msra.mxu0 0.0
    %747 = vmatprep.subr.mxu0 0.0
    %748 = vmatpush1.msra.mxu0 0.0
    %749 = vmatprep.subr.mxu0 0.0
    %750 = vmatpush1.msra.mxu0 0.0
    %751 = vmatprep.mubr.f32.mxu0 0.0
    %752 = vmatmul.mubr.f32.gmra.mrb[0].mxu0 %v595
    %v753 = vpop.f32.mrb[0].mxu0
    %v754 = vadd.f32 %v684, %v753
    %v755 = vpop.f32.mrb[0].mxu0
    %756 = vdwg.mxu0
    %v757 = vld [vmem:[%s8] sm:$0x1]
    %v759 = vlaneseq
    %v760 = vshrl.u32 %v759, 7
    %v761 = vsub.s32 0, %v760
    %v762 = vrot.slane %v757, %v761
    %v764 = vadd.f32 %v754, %v762
    %vm765 = vcmask 7168
    %766 = vst.msk [vmem:[%s9] sm:$0xff] %vm765, %v764
    // Predicated region
    $region58: #{tpu_custom_call.1} parent=1 // pred_check
      _
    $region59: #{tpu_custom_call.1} parent=1 // pred_check_branch
      %768 = sbr.rel (0) target = $region61
    $region60: #{tpu_custom_call.1} parent=1 // pred_region
      _
    $region61: #{tpu_custom_call.1} parent=1 // pred_fallthru
      _
    // Predicated region
    $region62: #{tpu_custom_call.1} parent=1 // pred_check
      _
    $region63: #{tpu_custom_call.1} parent=1 // pred_check_branch
      %770 = sbr.rel (0) target = $region65
    $region64: #{tpu_custom_call.1} parent=1 // pred_region
      _
    $region65: #{tpu_custom_call.1} parent=1 // pred_fallthru
      _
    %771 = vsyncpa [#allocation3], 1
    %772 = vsyncpa [#allocation5], 1
    %773 = vsyncpa [#allocation8], 1

</llo_original>
